<compile_context>
chip_gen: v6e
topology: v6e:2x2x1
jax: 0.10.0
libtpu: 0.0.40
codegen_flags: <defaults>
</compile_context>

<pallas_src>
import jax
import jax.numpy as jnp
from jax.experimental import pallas as pl
from jax.experimental.pallas import tpu as pltpu


def _weight_equalizer_kernel(scale_ref, x_ref, bias_ref, o_ref):
    # scale_ref: SMEM (1,) f32 scalar
    # x_ref/o_ref: VMEM tile (block_r, block_c) -- lane-dense
    # bias_ref:  VMEM tile (block_r, 1) f32, broadcasts across lanes
    s = scale_ref[0]
    x = x_ref[...].astype(jnp.float32)
    o_ref[...] = (x * s + bias_ref[...]).astype(o_ref.dtype)


def _round_up(v, m):
    return ((v + m - 1) // m) * m


def _num_tensorcores():
    """2 for dual-TensorCore chips (v7x), else 1.  Defensive: default 1."""
    try:
        kind = jax.devices()[0].device_kind.lower()
    except Exception:
        return 1
    return 2 if ("v7" in kind or "7x" in kind) else 1


def weight_equalizer_forward(x, scale, bias, *, min_pallas_bytes=1 << 20):
    """y = scale * x + bias[None, :, None, None], x in NCHW."""
    B, C, H, W = x.shape
    rows, cols = B * C, H * W
    dtype = x.dtype
    itemsize = jnp.dtype(dtype).itemsize
    total_bytes = rows * cols * itemsize

    # ---- XLA fallback: non-lane-dense rows or tiny tensors (fixed pallas_call
    # overhead dominates; masked <128-lane stores are ~4.5x slower). ----------
    if cols < 128 or total_bytes < min_pallas_bytes:
        y = (scale.astype(jnp.float32) * x.astype(jnp.float32)
             + bias.astype(jnp.float32)[None, :, None, None])
        return y.astype(dtype)

    # ---- Lane-dense 2D view: one row per (b, c); H*W maps to lanes. ---------
    x2 = x.reshape(rows, cols)
    scale_arr = jnp.reshape(scale, (1,)).astype(jnp.float32)
    bias_rows = jnp.tile(bias.astype(jnp.float32), B).reshape(rows, 1)

    # ---- Tile sizing: ~2 MiB per block, bounded in both dimensions. ---------
    packing = max(1, 4 // itemsize)        # rows per sublane (1 f32, 2 bf16, 4 int8)
    row_align = 8 * packing                # 8 / 16 / 32
    target_block_bytes = 2 * 1024 * 1024

    # Column block: full extent if it fits the budget at row_align rows,
    # otherwise a multiple of 128 lanes.
    max_cols_per_block = max(
        128, (target_block_bytes // (row_align * itemsize)) // 128 * 128)
    block_c = cols if cols <= max_cols_per_block else max_cols_per_block

    # Row block: multiple of row_align (or full extent for very short tensors),
    # capped so block_r * block_c stays near the target.
    rows_cap = max(row_align,
                   (target_block_bytes // max(1, block_c * itemsize))
                   // row_align * row_align)
    if rows <= row_align:
        block_r = rows                     # full-extent block (always legal)
    else:
        block_r = min(rows_cap, max(row_align, (rows // row_align) * row_align))

    # ---- Dual-TensorCore (v7x) balancing only; v5e/v6e keep one big block. --
    n_cores = _num_tensorcores()
    if n_cores >= 2:
        grid_r, grid_c = pl.cdiv(rows, block_r), pl.cdiv(cols, block_c)
        total_steps = grid_r * grid_c
        if total_steps == 1:
            if rows >= 2 * row_align:
                block_r = _round_up(pl.cdiv(rows, 2), row_align)
            elif cols >= 256:
                block_c = _round_up(pl.cdiv(cols, 2), 128)
        elif total_steps % 2 == 1 and grid_r > 1:
            # Nudge toward an even, balanced step count for the two TCs.
            block_r = max(row_align,
                          _round_up(pl.cdiv(rows, grid_r + 1), row_align))

    grid = (pl.cdiv(rows, block_r), pl.cdiv(cols, block_c))

    cost = pl.CostEstimate(
        flops=2 * rows * cols,
        transcendentals=0,
        bytes_accessed=2 * rows * cols * itemsize + rows * 4 + 4,
    )

    out2 = pl.pallas_call(
        _weight_equalizer_kernel,
        out_shape=jax.ShapeDtypeStruct((rows, cols), dtype),
        grid=grid,
        in_specs=[
            pl.BlockSpec(memory_space=pltpu.SMEM),               # scale (1,) f32
            pl.BlockSpec((block_r, block_c), lambda i, j: (i, j)),  # x tiles
            pl.BlockSpec((block_r, 1), lambda i, j: (i, 0)),        # per-row bias
        ],
        out_specs=pl.BlockSpec((block_r, block_c), lambda i, j: (i, j)),
        compiler_params=pltpu.CompilerParams(
            dimension_semantics=("parallel", "parallel"),
            vmem_limit_bytes=32 * 1024 * 1024,
        ),
        cost_estimate=cost,
    )(scale_arr, x2, bias_rows)

    return out2.reshape(B, C, H, W)


def init_weight_equalizer(key, c_in=4, c_out=4, ksize=3):
    """Deterministically build the 'incoming' Conv2d params and derive scale/bias,
    mirroring WeightEqualizer.__init__ (the weight normalization is glue; only
    scale and bias are consumed by forward)."""
    kw, kb = jax.random.split(key)
    weight = jax.random.normal(kw, (c_out, c_in, ksize, ksize), dtype=jnp.float32)
    bias = jax.random.normal(kb, (c_out,), dtype=jnp.float32)
    scale = jnp.sqrt(jnp.mean(weight ** 2))
    normalized_weight = weight / scale  # kept for parity with __init__; unused in forward
    return scale, bias, normalized_weight


if __name__ == "__main__":
    key = jax.random.PRNGKey(0)
    k_param, k_x = jax.random.split(key)

    B, C, H, W = 2, 4, 16, 16
    scale, bias, _ = init_weight_equalizer(k_param, c_in=4, c_out=C, ksize=3)
    x = jax.random.normal(k_x, (B, C, H, W), dtype=jnp.float32)

    # min_pallas_bytes=0 forces the Pallas path at this small demo shape so the
    # kernel itself is exercised (production default skips Pallas for <1 MiB).
    y = weight_equalizer_forward(x, scale, bias, min_pallas_bytes=0)
    y = jax.block_until_ready(y)

    # Reference (plain JAX) check of the forward semantics.
    y_ref = scale * x + bias[None, :, None, None]
    assert jnp.allclose(y, y_ref, atol=1e-6, rtol=1e-6), "mismatch vs reference"

    print("KERNEL_OK")
</pallas_src>

<mosaic_0001>
module attributes {stable_mosaic.version = 11 : i64} {
  func.func @_weight_equalizer_kernel(%arg0: i32, %arg1: i32, %arg2: memref<1xf32, #tpu.memory_space<smem>>, %arg3: memref<8x256xf32, #tpu.memory_space<vmem>>, %arg4: memref<8x1xf32, #tpu.memory_space<vmem>>, %arg5: memref<8x256xf32, #tpu.memory_space<vmem>>) attributes {dimension_semantics = [#tpu.dimension_semantics<parallel>, #tpu.dimension_semantics<parallel>], iteration_bounds = array<i64: 1, 1>, scalar_prefetch = 0 : i64, scratch_operands = 0 : i64, tpu.core_type = #tpu.core_type<tc>, window_params = [{transform_indices = @transform_0, window_bounds = array<i64: 1>}, {transform_indices = @transform_1, window_bounds = array<i64: 8, 256>}, {transform_indices = @transform_2, window_bounds = array<i64: 8, 1>}, {transform_indices = @transform_3, window_bounds = array<i64: 8, 256>}]} {
    %c0 = arith.constant 0 : index
    %0 = memref.load %arg2[%c0] : memref<1xf32, #tpu.memory_space<smem>>
    %c0_0 = arith.constant 0 : index
    %c0_1 = arith.constant 0 : index
    %1 = vector.load %arg3[%c0_0, %c0_1] : memref<8x256xf32, #tpu.memory_space<vmem>>, vector<8x256xf32>
    %2 = vector.broadcast %0 : f32 to vector<8x256xf32>
    %3 = arith.mulf %1, %2 : vector<8x256xf32>
    %c0_2 = arith.constant 0 : index
    %c0_3 = arith.constant 0 : index
    %4 = vector.load %arg4[%c0_2, %c0_3] : memref<8x1xf32, #tpu.memory_space<vmem>>, vector<8x1xf32>
    %5 = vector.broadcast %4 : vector<8x1xf32> to vector<8x256xf32>
    %6 = arith.addf %3, %5 : vector<8x256xf32>
    %c0_4 = arith.constant 0 : index
    %c0_5 = arith.constant 0 : index
    %7 = vector.load %arg5[%c0_4, %c0_5] : memref<8x256xf32, #tpu.memory_space<vmem>>, vector<8x256xf32>
    tpu.vector_store %arg5[%c0_4, %c0_5], %6 {strides = array<i32>} : memref<8x256xf32, #tpu.memory_space<vmem>>, vector<8x256xf32>,
    return
  }
  func.func @transform_0(%arg0: i32, %arg1: i32) -> i32 {
    %c0_i32 = arith.constant 0 : i32
    %c0_i32_0 = arith.constant 0 : i32
    return %c0_i32 : i32
  }
  func.func @transform_1(%arg0: i32, %arg1: i32) -> (i32, i32) {
    %c0_i32 = arith.constant 0 : i32
    return %arg0, %arg1 : i32, i32
  }
  func.func @transform_2(%arg0: i32, %arg1: i32) -> (i32, i32) {
    %c0_i32 = arith.constant 0 : i32
    %c0_i32_0 = arith.constant 0 : i32
    return %arg0, %c0_i32 : i32, i32
  }
  func.func @transform_3(%arg0: i32, %arg1: i32) -> (i32, i32) {
    %c0_i32 = arith.constant 0 : i32
    return %arg0, %arg1 : i32, i32
  }
}

</mosaic_0001>

<llo_original>
// kernel: tpu_custom_call.1
$region0: #{tpu_custom_call.1}
  #allocation0 [shape = 'u32[]', space=smem, size = 0x4, offset = 0x4, fixed_abs, tag = 'smem constant byte address 0x4 - core index']
  #allocation1 [shape = 'u32[144,128]{1,0:T(1,128)}', space=vmem, size = 0x12000, scoped, tag = 'internal scratch']
  #allocation2 [shape = 'f32[1]{0:T(128)S(6)}', space=smem, size = 0x200, scoped, tag = 'scoped memory for tpu_custom_call.1']
  %s0 = inlined_call_operand.<no memory space> [shape: f32[1], index: 0, kind: input, shape index: {}]
  %s1 = inlined_call_operand.hbm [shape: f32[8,256], index: 1, kind: input, shape index: {}]
  %s2 = inlined_call_operand.vmem [shape: f32[8,1], index: 2, kind: input, shape index: {}]
  %s3 = inlined_call_operand.hbm [shape: f32[8,256], index: 3, kind: output, shape index: {}]
  %s4 = sld [smem:[#allocation0]]
  $region26: #{tpu_custom_call.1} parent=0
    _
  %s6 = ssub.s32 1, %s4
  %s7 = scalar_select 0, %s6, %s4
  %8 = sst [smem:[#allocation2]] %s0
  $region1: #{tpu_custom_call.1} parent=0
    #allocation3 [shape = 'u8[8192]{0}', space=vmem, size = 0x2000, scoped, tag = 'input window, operand 1, single buffered']
    #allocation4 [shape = 's32[1]{0}', space=sflag, size = 0x4, scoped, tag = 'scoped memory for tpu_custom_call.1']
    #allocation5 [shape = 's32[1]{0}', space=sflag, size = 0x4, scoped, tag = 'scoped memory for tpu_custom_call.1']
    #allocation6 [shape = 'u8[8192]{0}', space=vmem, size = 0x2000, scoped, tag = 'output window, operand 0, single buffered']
    %9 = vsyncpa [#allocation4], 0
    %10 = vsyncpa [#allocation5], 0
    // Predicated region
    $region2: #{tpu_custom_call.1} parent=1 // pred_check
      _
    $region3: #{tpu_custom_call.1} parent=1 // pred_check_branch
      %12 = sbr.rel (0) target = $region5
    $region4: #{tpu_custom_call.1} parent=1 // pred_region
      _
    $region5: #{tpu_custom_call.1} parent=1 // pred_fallthru
      _
    // Predicated region
    $region6: #{tpu_custom_call.1} parent=1 // pred_check
      _
    $region7: #{tpu_custom_call.1} parent=1 // pred_check_branch
      %14 = sbr.rel (0) target = $region9
    $region8: #{tpu_custom_call.1} parent=1 // pred_region
      %s16 = ssub.s32 256, 256
      %17 = vsyncadd [#allocation4], %s16
      %s19 = sshll.u32 [#allocation3], 4
      %s20 = int_to_ptr.vmem [resolvable:$true] %s19
      %22 = dma.hbm_to_vmem [thread:$0]  %s1, 256, %s20, [#allocation4]
    $region9: #{tpu_custom_call.1} parent=1 // pred_fallthru
      _
    // Predicated region
    $region10: #{tpu_custom_call.1} parent=1 // pred_check
      _
    $region11: #{tpu_custom_call.1} parent=1 // pred_check_branch
      %24 = sbr.rel (0) target = $region13
    $region12: #{tpu_custom_call.1} parent=1 // pred_region
      _
    $region13: #{tpu_custom_call.1} parent=1 // pred_fallthru
      _
    // Predicated region
    $region14: #{tpu_custom_call.1} parent=1 // pred_check
      _
    $region15: #{tpu_custom_call.1} parent=1 // pred_check_branch
      %26 = sbr.rel (0) target = $region17
    $region16: #{tpu_custom_call.1} parent=1 // pred_region
      %27 = dma.done [#allocation4], 256
    $region17: #{tpu_custom_call.1} parent=1 // pred_fallthru
      _
    %s28 = sld [smem:[#allocation2]]
    %v29 = vld [vmem:[#allocation3] sm:$0xff]
    %v30 = vld [vmem:[#allocation3 + $0x8] sm:$0xff]
    %v31 = vstv %s28
    %v32 = vmul.f32 %v29, %v31
    %v33 = vmul.f32 %v30, %v31
    %v34 = vld [vmem:[%s2] sm:$0xff]
    %36 = vset.pattern.permute.xlu0 0
    %37 = vperm.xlu0 %36, %v34
    %v38 = vpop.permute.xlu0 %37
    %v40 = vadd.f32 %v32, %v38
    %v41 = vadd.f32 %v33, %v38
    %42 = vst [vmem:[#allocation6] sm:$0xff] %v40
    %43 = vst [vmem:[#allocation6 + $0x8] sm:$0xff] %v41
    // Predicated region
    $region18: #{tpu_custom_call.1} parent=1 // pred_check
      _
    $region19: #{tpu_custom_call.1} parent=1 // pred_check_branch
      %45 = sbr.rel (0) target = $region21
    $region20: #{tpu_custom_call.1} parent=1 // pred_region
      %s47 = ssub.s32 256, 256
      %48 = vsyncadd [#allocation5], %s47
      %s50 = sshll.u32 [#allocation6], 4
      %s51 = int_to_ptr.vmem [resolvable:$true] %s50
      %53 = dma.vmem_to_hbm [thread:$0]  %s51, 256, %s3, [#allocation5]
    $region21: #{tpu_custom_call.1} parent=1 // pred_fallthru
      _
    // Predicated region
    $region22: #{tpu_custom_call.1} parent=1 // pred_check
      _
    $region23: #{tpu_custom_call.1} parent=1 // pred_check_branch
      %55 = sbr.rel (0) target = $region25
    $region24: #{tpu_custom_call.1} parent=1 // pred_region
      %56 = dma.done [#allocation5], 256
    $region25: #{tpu_custom_call.1} parent=1 // pred_fallthru
      _
    %57 = vsyncpa [#allocation4], 1
    %58 = vsyncpa [#allocation5], 1

</llo_original>
